<compile_context>
chip_gen: v6e
topology: v6e:2x2x1
jax: 0.10.0
libtpu: 0.0.40
codegen_flags: <defaults>
</compile_context>

<pallas_src>
import functools

import jax
import jax.numpy as jnp
from jax import lax
from jax.experimental import pallas as pl
from jax.experimental.pallas import tpu as pltpu


def _mha_fused_kernel(x_ref, w_ref, o_ref, *, num_heads, d_out):
    """One batch element: fused QKV projection + per-head causal softmax attention.

    x_ref: (1, T, d_in)  VMEM
    w_ref: (d_in, 3*H*d_out) VMEM   columns = [Q_h0..Q_hH-1 | K_h0.. | V_h0..]
    o_ref: (1, T, H*d_out) VMEM     final concatenated layout, written once.
    """
    x = x_ref[0]            # (T, d_in)        (keep input dtype; MXU accumulates in f32)
    w = w_ref[...]          # (d_in, 3*H*d_out)
    T = x.shape[0]
    hd = num_heads * d_out

    # Single fused projection for all heads and all of Q/K/V (lane-dense MXU matmul).
    qkv = jnp.dot(x, w, preferred_element_type=jnp.float32)   # (T, 3*H*d_out) f32

    # Causal mask (full T visible in this tile, so local indices == global indices).
    row = lax.broadcasted_iota(jnp.int32, (T, T), 0)
    col = lax.broadcasted_iota(jnp.int32, (T, T), 1)
    causal = col > row                                         # True -> masked

    scale = jnp.float32(1.0 / (float(d_out) ** 0.5))

    ctxs = []
    for h in range(num_heads):                                 # static unroll; H is small
        q = qkv[:, h * d_out:(h + 1) * d_out] * scale          # scale folded into q
        k = qkv[:, hd + h * d_out: hd + (h + 1) * d_out]
        v = qkv[:, 2 * hd + h * d_out: 2 * hd + (h + 1) * d_out]

        # scores = q @ k^T without materializing k.T (contract last dims directly).
        s = lax.dot_general(q, k, (((1,), (1,)), ((), ())),
                            preferred_element_type=jnp.float32)  # (T, T)
        s = jnp.where(causal, -jnp.inf, s)

        # Numerically-stable softmax over keys (f32 math; EUP reciprocal).
        m = jnp.max(s, axis=-1, keepdims=True)
        p = jnp.exp(s - m)
        denom = jnp.sum(p, axis=-1, keepdims=True)
        attn = p * pl.reciprocal(denom, approx=True)

        ctxs.append(jnp.dot(attn, v, preferred_element_type=jnp.float32))  # (T, d_out)

    # One lane-dense store of the concatenated heads: (T, H*d_out).
    o_ref[0] = jnp.concatenate(ctxs, axis=-1).astype(o_ref.dtype)


def multi_head_attention(x, wq, wk, wv):
    """x: (B, T, d_in); wq/wk/wv: (H, d_in, d_out) -> (B, T, H*d_out).

    Matches torch.cat([CausalAttention_h(x) for h in heads], dim=-1).
    """
    B, T, d_in = x.shape
    H, _, d_out = wq.shape

    # Fuse per-head weights into a single (d_in, 3*H*d_out) operand.
    def fuse(w):  # (H, d_in, d_out) -> (d_in, H*d_out), head-major along columns
        return jnp.transpose(w, (1, 0, 2)).reshape(d_in, H * d_out)

    w_qkv = jnp.concatenate([fuse(wq), fuse(wk), fuse(wv)], axis=-1)

    kernel = functools.partial(_mha_fused_kernel, num_heads=H, d_out=d_out)

    return pl.pallas_call(
        kernel,
        out_shape=jax.ShapeDtypeStruct((B, T, H * d_out), x.dtype),
        grid=(B,),
        in_specs=[
            # x: one batch row per grid step.
            pl.BlockSpec((1, T, d_in), lambda b: (b, 0, 0)),
            # fused weights: block index invariant across the grid -> DMA'd once.
            pl.BlockSpec((d_in, 3 * H * d_out), lambda b: (0, 0)),
        ],
        # Kernel writes the final concatenated layout directly (no transpose glue).
        out_specs=pl.BlockSpec((1, T, H * d_out), lambda b: (b, 0, 0)),
        compiler_params=pltpu.CompilerParams(
            dimension_semantics=("parallel",)),   # batch axis shards across TCs (v7x)
    )(x, w_qkv)


def reference_forward(x, wq, wk, wv):
    """Pure-JAX reference matching the PyTorch MultiHeadAttentionWrapper forward."""
    B, T, _ = x.shape
    H, _, d_out = wq.shape
    mask = jnp.triu(jnp.ones((T, T), dtype=bool), k=1)
    outs = []
    for h in range(H):
        q = x @ wq[h]
        k = x @ wk[h]
        v = x @ wv[h]
        s = jnp.einsum("btd,bsd->bts", q, k)
        s = jnp.where(mask[None], -jnp.inf, s)
        w = jax.nn.softmax(s / jnp.sqrt(jnp.float32(d_out)), axis=-1)
        outs.append(jnp.einsum("bts,bsd->btd", w, v))
    return jnp.concatenate(outs, axis=-1)


if __name__ == "__main__":
    # Small shapes consistent with the module's forward: x is (batch, seq, d_in)
    B, T, d_in, d_out, H = 2, 8, 16, 16, 2   # context_length = T, dropout = 0.0, qkv_bias = False

    key = jax.random.PRNGKey(0)
    kx, kq, kk, kv = jax.random.split(key, 4)

    x = jax.random.normal(kx, (B, T, d_in), dtype=jnp.float32)
    # Deterministic synthetic init of per-head Linear weights (no bias, qkv_bias=False).
    wq = 0.02 * jax.random.normal(kq, (H, d_in, d_out), dtype=jnp.float32)
    wk = 0.02 * jax.random.normal(kk, (H, d_in, d_out), dtype=jnp.float32)
    wv = 0.02 * jax.random.normal(kv, (H, d_in, d_out), dtype=jnp.float32)

    out = multi_head_attention(x, wq, wk, wv)
    out = jax.block_until_ready(out)

    ref = reference_forward(x, wq, wk, wv)
    assert out.shape == (B, T, H * d_out), out.shape
    # Tolerance accounts for the approximate EUP reciprocal in the softmax normalization.
    assert jnp.allclose(out, ref, atol=1e-3, rtol=1e-3), "mismatch vs JAX reference"

    print("KERNEL_OK")
</pallas_src>

<mosaic_0001>
module attributes {stable_mosaic.version = 11 : i64} {
  func.func @_mha_fused_kernel(%arg0: i32, %arg1: memref<1x8x16xf32, #tpu.memory_space<vmem>>, %arg2: memref<16x96xf32, #tpu.memory_space<vmem>>, %arg3: memref<1x8x32xf32, #tpu.memory_space<vmem>>) attributes {dimension_semantics = [#tpu.dimension_semantics<parallel>], iteration_bounds = array<i64: 2>, scalar_prefetch = 0 : i64, scratch_operands = 0 : i64, tpu.core_type = #tpu.core_type<tc>, window_params = [{transform_indices = @transform_0, window_bounds = array<i64: 1, 8, 16>}, {pipeline_mode = #tpu.pipeline_mode<synchronous>, transform_indices = @transform_1, window_bounds = array<i64: 16, 96>}, {transform_indices = @transform_2, window_bounds = array<i64: 1, 8, 32>}]} {
    %c0 = arith.constant 0 : index
    %c0_0 = arith.constant 0 : index
    %c0_1 = arith.constant 0 : index
    %0 = vector.load %arg1[%c0, %c0_0, %c0_1] : memref<1x8x16xf32, #tpu.memory_space<vmem>>, vector<1x8x16xf32>
    %1 = vector.shape_cast %0 : vector<1x8x16xf32> to vector<8x16xf32>
    %c0_2 = arith.constant 0 : index
    %c0_3 = arith.constant 0 : index
    %2 = vector.load %arg2[%c0_2, %c0_3] : memref<16x96xf32, #tpu.memory_space<vmem>>, vector<16x96xf32>
    %cst = arith.constant dense<0.000000e+00> : vector<8x96xf32>
    %3 = tpu.matmul %1, %2, %cst {dimension_numbers = #tpu.dot_dimension_numbers<[1], [0], [0], [1], [0, 0, 1, 1], [], []>} : vector<8x16xf32>, vector<16x96xf32>, vector<8x96xf32> -> vector<8x96xf32>
    %4 = tpu.iota {dimensions = array<i32: 0>} : vector<8x8xi32>
    %5 = tpu.iota {dimensions = array<i32: 1>} : vector<8x8xi32>
    %6 = arith.cmpi sgt, %5, %4 : vector<8x8xi32>
    %7 = vector.extract_strided_slice %3 {offsets = [0, 0], sizes = [8, 16], strides = [1, 1]} : vector<8x96xf32> to vector<8x16xf32>
    %cst_4 = arith.constant 2.500000e-01 : f32
    %8 = vector.broadcast %cst_4 : f32 to vector<8x16xf32>
    %9 = arith.mulf %7, %8 : vector<8x16xf32>
    %10 = vector.extract_strided_slice %3 {offsets = [0, 32], sizes = [8, 16], strides = [1, 1]} : vector<8x96xf32> to vector<8x16xf32>
    %11 = vector.extract_strided_slice %3 {offsets = [0, 64], sizes = [8, 16], strides = [1, 1]} : vector<8x96xf32> to vector<8x16xf32>
    %cst_5 = arith.constant dense<0.000000e+00> : vector<8x8xf32>
    %12 = tpu.matmul %9, %10, %cst_5 {dimension_numbers = #tpu.dot_dimension_numbers<[1], [1], [0], [0], [0, 0, 1, 0], [], []>} : vector<8x16xf32>, vector<8x16xf32>, vector<8x8xf32> -> vector<8x8xf32>
    %cst_6 = arith.constant 0xFF800000 : f32
    %13 = vector.broadcast %cst_6 : f32 to vector<8x8xf32>
    %14 = arith.select %6, %13, %12 : vector<8x8xi1>, vector<8x8xf32>
    %cst_7 = arith.constant dense<0xFF800000> : vector<8xf32>
    %15 = vector.multi_reduction <maximumf>, %14, %cst_7 [1] : vector<8x8xf32> to vector<8xf32>
    %16 = vector.shape_cast %15 : vector<8xf32> to vector<8x1xf32>
    %17 = vector.broadcast %16 : vector<8x1xf32> to vector<8x8xf32>
    %18 = arith.subf %14, %17 : vector<8x8xf32>
    %19 = math.exp %18 : vector<8x8xf32>
    %cst_8 = arith.constant dense<0.000000e+00> : vector<8xf32>
    %20 = vector.multi_reduction <add>, %19, %cst_8 [1] : vector<8x8xf32> to vector<8xf32>
    %21 = vector.shape_cast %20 : vector<8xf32> to vector<8x1xf32>
    %22 = tpu.reciprocal %21 {approx = true} : vector<8x1xf32> -> vector<8x1xf32>
    %23 = vector.broadcast %22 : vector<8x1xf32> to vector<8x8xf32>
    %24 = arith.mulf %19, %23 : vector<8x8xf32>
    %cst_9 = arith.constant dense<0.000000e+00> : vector<8x16xf32>
    %25 = tpu.matmul %24, %11, %cst_9 {dimension_numbers = #tpu.dot_dimension_numbers<[1], [0], [0], [1], [0, 0, 1, 1], [], []>} : vector<8x8xf32>, vector<8x16xf32>, vector<8x16xf32> -> vector<8x16xf32>
    %26 = vector.extract_strided_slice %3 {offsets = [0, 16], sizes = [8, 16], strides = [1, 1]} : vector<8x96xf32> to vector<8x16xf32>
    %cst_10 = arith.constant 2.500000e-01 : f32
    %27 = vector.broadcast %cst_10 : f32 to vector<8x16xf32>
    %28 = arith.mulf %26, %27 : vector<8x16xf32>
    %29 = vector.extract_strided_slice %3 {offsets = [0, 48], sizes = [8, 16], strides = [1, 1]} : vector<8x96xf32> to vector<8x16xf32>
    %30 = vector.extract_strided_slice %3 {offsets = [0, 80], sizes = [8, 16], strides = [1, 1]} : vector<8x96xf32> to vector<8x16xf32>
    %cst_11 = arith.constant dense<0.000000e+00> : vector<8x8xf32>
    %31 = tpu.matmul %28, %29, %cst_11 {dimension_numbers = #tpu.dot_dimension_numbers<[1], [1], [0], [0], [0, 0, 1, 0], [], []>} : vector<8x16xf32>, vector<8x16xf32>, vector<8x8xf32> -> vector<8x8xf32>
    %cst_12 = arith.constant 0xFF800000 : f32
    %32 = vector.broadcast %cst_12 : f32 to vector<8x8xf32>
    %33 = arith.select %6, %32, %31 : vector<8x8xi1>, vector<8x8xf32>
    %cst_13 = arith.constant dense<0xFF800000> : vector<8xf32>
    %34 = vector.multi_reduction <maximumf>, %33, %cst_13 [1] : vector<8x8xf32> to vector<8xf32>
    %35 = vector.shape_cast %34 : vector<8xf32> to vector<8x1xf32>
    %36 = vector.broadcast %35 : vector<8x1xf32> to vector<8x8xf32>
    %37 = arith.subf %33, %36 : vector<8x8xf32>
    %38 = math.exp %37 : vector<8x8xf32>
    %cst_14 = arith.constant dense<0.000000e+00> : vector<8xf32>
    %39 = vector.multi_reduction <add>, %38, %cst_14 [1] : vector<8x8xf32> to vector<8xf32>
    %40 = vector.shape_cast %39 : vector<8xf32> to vector<8x1xf32>
    %41 = tpu.reciprocal %40 {approx = true} : vector<8x1xf32> -> vector<8x1xf32>
    %42 = vector.broadcast %41 : vector<8x1xf32> to vector<8x8xf32>
    %43 = arith.mulf %38, %42 : vector<8x8xf32>
    %cst_15 = arith.constant dense<0.000000e+00> : vector<8x16xf32>
    %44 = tpu.matmul %43, %30, %cst_15 {dimension_numbers = #tpu.dot_dimension_numbers<[1], [0], [0], [1], [0, 0, 1, 1], [], []>} : vector<8x8xf32>, vector<8x16xf32>, vector<8x16xf32> -> vector<8x16xf32>
    %45 = tpu.concatenate %25, %44 in 1 : vector<8x16xf32>, vector<8x16xf32> -> vector<8x32xf32>
    %c0_16 = arith.constant 0 : index
    %c0_17 = arith.constant 0 : index
    %c0_18 = arith.constant 0 : index
    %46 = vector.load %arg3[%c0_16, %c0_17, %c0_18] : memref<1x8x32xf32, #tpu.memory_space<vmem>>, vector<1x8x32xf32>
    %47 = vector.shape_cast %46 : vector<1x8x32xf32> to vector<8x32xf32>
    %48 = vector.shape_cast %45 : vector<8x32xf32> to vector<1x8x32xf32>
    tpu.vector_store %arg3[%c0_16, %c0_17, %c0_18], %48 {strides = array<i32>} : memref<1x8x32xf32, #tpu.memory_space<vmem>>, vector<1x8x32xf32>,
    return
  }
  func.func @transform_0(%arg0: i32) -> (i32, i32, i32) {
    %c0_i32 = arith.constant 0 : i32
    %c0_i32_0 = arith.constant 0 : i32
    %c0_i32_1 = arith.constant 0 : i32
    return %arg0, %c0_i32, %c0_i32_0 : i32, i32, i32
  }
  func.func @transform_1(%arg0: i32) -> (i32, i32) {
    %c0_i32 = arith.constant 0 : i32
    %c0_i32_0 = arith.constant 0 : i32
    %c0_i32_1 = arith.constant 0 : i32
    return %c0_i32, %c0_i32_0 : i32, i32
  }
  func.func @transform_2(%arg0: i32) -> (i32, i32, i32) {
    %c0_i32 = arith.constant 0 : i32
    %c0_i32_0 = arith.constant 0 : i32
    %c0_i32_1 = arith.constant 0 : i32
    return %arg0, %c0_i32, %c0_i32_0 : i32, i32, i32
  }
}

</mosaic_0001>

<llo_original>
// kernel: tpu_custom_call.1
$region0: #{tpu_custom_call.1}
  #allocation0 [shape = 'u32[]', space=smem, size = 0x4, offset = 0x4, fixed_abs, tag = 'smem constant byte address 0x4 - core index']
  #allocation1 [shape = 'u32[144,128]{1,0:T(1,128)}', space=vmem, size = 0x12000, scoped, tag = 'internal scratch']
  %s0 = inlined_call_operand.hbm [shape: f32[2,8,16], index: 0, kind: input, shape index: {}]
  %s1 = inlined_call_operand.hbm [shape: f32[16,96], index: 1, kind: input, shape index: {}]
  %s2 = inlined_call_operand.hbm [shape: f32[2,8,32], index: 2, kind: output, shape index: {}]
  %s3 = sld [smem:[#allocation0]]
  $region49: #{tpu_custom_call.1} parent=0
    _
  %s5 = ssub.s32 1, %s3
  %s6 = scalar_select 0, %s5, %s3
  $region1: #{tpu_custom_call.1} parent=0
    #allocation2 [shape = 'u8[8192]{0}', space=vmem, size = 0x2000, scoped, tag = 'input window, operand 0']
    #allocation3 [shape = 's32[2]{0}', space=sflag, size = 0x8, scoped, tag = 'scoped memory for tpu_custom_call.1']
    #allocation4 [shape = 's32[2]{0}', space=sflag, size = 0x8, scoped, tag = 'scoped memory for tpu_custom_call.1']
    #allocation5 [shape = 'u8[8192]{0}', space=vmem, size = 0x2000, scoped, tag = 'input window, operand 1, single buffered']
    #allocation6 [shape = 's32[1]{0}', space=sflag, size = 0x4, scoped, tag = 'scoped memory for tpu_custom_call.1']
    #allocation7 [shape = 'u8[8192]{0}', space=vmem, size = 0x2000, scoped, tag = 'output window, operand 0']
    %7 = vsyncpa [#allocation3], 0
    %s8 = scalar_lea.sflag [#allocation3], 1
    %9 = vsyncpa %s8, 0
    %10 = vsyncpa [#allocation6], 0
    %11 = vsyncpa [#allocation4], 0
    %s12 = scalar_lea.sflag [#allocation4], 1
    %13 = vsyncpa %s12, 0
    loop: start=0, step=1, limit=4
    $region2: #{tpu_custom_call.1} parent=1 // loop_pre_header
      _
    $region3: #{tpu_custom_call.1} parent=1 // loop_header
      %s15 = sphi 0, %s19
      %p16 = scmp.ge.s32.totalorder %s15, 4
      %s25 = sphi 0, %s27
      %s28 = sphi 0, %s25
      %s29 = sphi 0, %s28
      %s45 = sphi 0, %s29
      %s49 = sphi 0, %s49
      %s51 = sphi 0, %s49
      %s52 = sphi 0, %s51
      %s66 = sphi 0, %s52
      %s72 = sphi 0, %s74
      %s75 = sphi 0, %s72
      %s76 = sphi 0, %s75
      %s92 = sphi 0, %s76
    $region4: #{tpu_custom_call.1} parent=1 // loop_header_branch
      %18 = sbr.rel (%p16) target = $region8
    $region5: #{tpu_custom_call.1} parent=1 // loop_body
      %s20 = ssub.s32 %s15, 1
      %s21 = ssub.s32 %s15, 2
      %s22 = sadd.s32 %s15, 1
      %s23 = ssub.s32 %s15, %s22
      %p24 = scmp.eq.s32.totalorder %s23, 0
      %s26 = sadd.s32 %s25, 1
      %s27 = scalar_select %p24, %s25, %s26
      %p30 = pneg %p24
      %p31 = scmp.eq.s32.totalorder %s15, 1
      %p32 = por %p30, %p31
      %p33 = scmp.ne.s32.totalorder %s25, %s28
      %p34 = scmp.eq.s32.totalorder %s15, 0
      %p35 = por %p33, %p34
      %p36 = scmp.ne.s32.totalorder %s25, %s28
      %p37 = scmp.eq.s32.totalorder %s20, 1
      %p38 = por %p36, %p37
      %p39 = scmp.ne.s32.totalorder %s28, %s29
      %p40 = scmp.eq.s32.totalorder %s20, 0
      %p41 = por %p39, %p40
      %p42 = scmp.ne.s32.totalorder %s28, %s29
      %p43 = scmp.eq.s32.totalorder %s21, 1
      %p44 = por %p42, %p43
      %p46 = scmp.ne.s32.totalorder %s29, %s45
      %p47 = scmp.eq.s32.totalorder %s21, 0
      %p48 = por %p46, %p47
      %s50 = sadd.s32 %s49, 1
      %p53 = scmp.eq.s32.totalorder %s15, 1
      %p54 = scmp.ne.s32.totalorder %s49, %s51
      %p55 = scmp.eq.s32.totalorder %s15, 0
      %p56 = por %p54, %p55
      %p57 = scmp.ne.s32.totalorder %s49, %s51
      %p58 = scmp.eq.s32.totalorder %s20, 1
      %p59 = por %p57, %p58
      %p60 = scmp.ne.s32.totalorder %s51, %s52
      %p61 = scmp.eq.s32.totalorder %s20, 0
      %p62 = por %p60, %p61
      %p63 = scmp.ne.s32.totalorder %s51, %s52
      %p64 = scmp.eq.s32.totalorder %s21, 1
      %p65 = por %p63, %p64
      %p67 = scmp.ne.s32.totalorder %s52, %s66
      %p68 = scmp.eq.s32.totalorder %s21, 0
      %p69 = por %p67, %p68
      %s70 = ssub.s32 %s15, %s22
      %p71 = scmp.eq.s32.totalorder %s70, 0
      %s73 = sadd.s32 %s72, 1
      %s74 = scalar_select %p71, %s72, %s73
      %p77 = pneg %p71
      %p78 = scmp.eq.s32.totalorder %s15, 1
      %p79 = por %p77, %p78
      %p80 = scmp.ne.s32.totalorder %s72, %s75
      %p81 = scmp.eq.s32.totalorder %s15, 0
      %p82 = por %p80, %p81
      %p83 = scmp.ne.s32.totalorder %s72, %s75
      %p84 = scmp.eq.s32.totalorder %s20, 1
      %p85 = por %p83, %p84
      %p86 = scmp.ne.s32.totalorder %s75, %s76
      %p87 = scmp.eq.s32.totalorder %s20, 0
      %p88 = por %p86, %p87
      %p89 = scmp.ne.s32.totalorder %s75, %s76
      %p90 = scmp.eq.s32.totalorder %s21, 1
      %p91 = por %p89, %p90
      %p93 = scmp.ne.s32.totalorder %s76, %s92
      %p94 = scmp.eq.s32.totalorder %s21, 0
      %p95 = por %p93, %p94
      %p96 = scmp.le.s32.totalorder 1, %s15
      %p97 = scmp.lt.s32.totalorder %s15, 3
      %p98 = pnand %p96, %p97
      %p99 = pneg %p98
      // Predicated region
      $region9: #{tpu_custom_call.1} parent=5 // pred_check
        _
      $region10: #{tpu_custom_call.1} parent=5 // pred_check_branch
        %101 = sbr.rel (%p98) target = $region12
      $region11: #{tpu_custom_call.1} parent=5 // pred_region
        %s102 = ssub.s32 %s15, 1
        // Predicated region
        $region13: #{tpu_custom_call.1} parent=11 // pred_check
          %p103 = pneg %p62
        $region14: #{tpu_custom_call.1} parent=11 // pred_check_branch
          %105 = sbr.rel (%p103) target = $region16
        $region15: #{tpu_custom_call.1} parent=11 // pred_region
          %s107 = ssub.s32 256, 256
          %108 = vsyncadd [#allocation6], %s107
          %s109 = sshll.u32 [#allocation5], 4
          %s110 = int_to_ptr.vmem [resolvable:$true] %s109
          %115 = dma.hbm_to_vmem [thread:$0]  %s1, 256, %s110, [#allocation6], 128, 128, 8
        $region16: #{tpu_custom_call.1} parent=11 // pred_fallthru
          _
      $region12: #{tpu_custom_call.1} parent=5 // pred_fallthru
        _
      %p116 = scmp.lt.s32.totalorder %s15, 2
      // Predicated region
      $region17: #{tpu_custom_call.1} parent=5 // pred_check
        %p117 = pneg %p116
      $region18: #{tpu_custom_call.1} parent=5 // pred_check_branch
        %119 = sbr.rel (%p117) target = $region20
      $region19: #{tpu_custom_call.1} parent=5 // pred_region
        // Predicated region
        $region21: #{tpu_custom_call.1} parent=19 // pred_check
          %p120 = pneg %p35
        $region22: #{tpu_custom_call.1} parent=19 // pred_check_branch
          %122 = sbr.rel (%p120) target = $region24
        $region23: #{tpu_custom_call.1} parent=19 // pred_region
          %s123 = sand.u32 %s25, 1
          %s124 = scalar_lea.sflag [#allocation3], %s123
          %s125 = sand.u32 %s25, 1
          %s126 = smul.addr %s125, 8
          %s127 = scalar_lea.vmem [#allocation2], %s126
          %s129 = ssub.s32 128, 128
          %130 = vsyncadd %s124, %s129
          %s131 = smul.addr %s15, 128
          %s132 = scalar_lea.hbm %s0, %s131
          %s134 = sshll.u32 %s127, 4
          %s135 = int_to_ptr.vmem [resolvable:$true] %s134
          %137 = dma.hbm_to_vmem [thread:$0]  %s132, 128, %s135, %s124
        $region24: #{tpu_custom_call.1} parent=19 // pred_fallthru
          _
      $region20: #{tpu_custom_call.1} parent=5 // pred_fallthru
        _
      %p138 = scmp.le.s32.totalorder 1, %s15
      %p139 = scmp.lt.s32.totalorder %s15, 3
      %p140 = pnand %p138, %p139
      %p141 = pneg %p140
      // Predicated region
      $region25: #{tpu_custom_call.1} parent=5 // pred_check
        _
      $region26: #{tpu_custom_call.1} parent=5 // pred_check_branch
        %143 = sbr.rel (%p140) target = $region28
      $region27: #{tpu_custom_call.1} parent=5 // pred_region
        %s144 = ssub.s32 %s15, 1
        %s145 = sand.u32 %s28, 1
        %s146 = scalar_lea.sflag [#allocation3], %s145
        %s147 = sand.u32 %s28, 1
        %s148 = smul.addr %s147, 8
        %s149 = scalar_lea.vmem [#allocation2], %s148
        // Predicated region
        $region29: #{tpu_custom_call.1} parent=27 // pred_check
          %p150 = pneg %p41
        $region30: #{tpu_custom_call.1} parent=27 // pred_check_branch
          %152 = sbr.rel (%p150) target = $region32
        $region31: #{tpu_custom_call.1} parent=27 // pred_region
          %153 = dma.done %s146, 128
        $region32: #{tpu_custom_call.1} parent=27 // pred_fallthru
          _
        // Predicated region
        $region33: #{tpu_custom_call.1} parent=27 // pred_check
          %p154 = pneg %p62
        $region34: #{tpu_custom_call.1} parent=27 // pred_check_branch
          %156 = sbr.rel (%p154) target = $region36
        $region35: #{tpu_custom_call.1} parent=27 // pred_region
          %157 = dma.done [#allocation6], 256
        $region36: #{tpu_custom_call.1} parent=27 // pred_fallthru
          _
        %s158 = sand.u32 %s28, 1
        %s159 = scalar_lea.sflag [#allocation3], %s158
        %s160 = sand.u32 %s28, 1
        %s161 = smul.addr %s160, 8
        %s162 = scalar_lea.vmem [#allocation2], %s161
        %p163 = pneg %p41
        %p164 = pneg %p38
        %p165 = pneg %p62
        %p166 = pneg %p59
        %p167 = pneg %p88
        %p168 = pneg %p85
        %s169 = sand.u32 %s75, 1
        %s170 = scalar_lea.sflag [#allocation4], %s169
        %s171 = sand.u32 %s75, 1
        %s172 = smul.addr %s171, 8
        %s173 = scalar_lea.vmem [#allocation7], %s172
        %v174 = vld [vmem:[%s149] sm:$0xff]
        %v175 = vld [vmem:[#allocation5] sm:$0xff]
        %v176 = vld [vmem:[#allocation5 + $0x8] sm:$0xff]
        %vm177 = vcmask 130048
        %v179 = vsel %vm177, %v174, 0
        %181 = vmatprep.subr.mxu0 0.0
        %182 = vmatpush1.msra.mxu0 0.0
        %183 = vmatprep.subr.mxu0 0.0
        %184 = vmatpush1.msra.mxu0 0.0
        %185 = vmatprep.subr.mxu0 0.0
        %186 = vmatpush1.msra.mxu0 0.0
        %187 = vmatprep.subr.mxu0 0.0
        %188 = vmatpush1.msra.mxu0 0.0
        %189 = vmatprep.subr.mxu0 0.0
        %190 = vmatpush1.msra.mxu0 0.0
        %191 = vmatprep.subr.mxu0 0.0
        %192 = vmatpush1.msra.mxu0 0.0
        %193 = vmatprep.subr.mxu0 0.0
        %194 = vmatpush1.msra.mxu0 0.0
        %195 = vmatprep.subr.mxu0 0.0
        %196 = vmatpush1.msra.mxu0 0.0
        %197 = vmatprep.subr.mxu0 0.0
        %198 = vmatpush1.msra.mxu0 0.0
        %199 = vmatprep.subr.mxu0 0.0
        %200 = vmatpush1.msra.mxu0 0.0
        %201 = vmatprep.subr.mxu0 0.0
        %202 = vmatpush1.msra.mxu0 0.0
        %203 = vmatprep.subr.mxu0 0.0
        %204 = vmatpush1.msra.mxu0 0.0
        %205 = vmatprep.subr.mxu0 0.0
        %206 = vmatpush1.msra.mxu0 0.0
        %207 = vmatprep.subr.mxu0 0.0
        %208 = vmatpush1.msra.mxu0 0.0
        %209 = vmatprep.subr.mxu0 0.0
        %210 = vmatpush1.msra.mxu0 %v176
        %211 = vmatprep.subr.mxu0 0.0
        %212 = vmatpush1.msra.mxu0 %v175
        %213 = vmatprep.subr.mxu0 0.0
        %214 = vmatpush2.msra.mxu0 0.0
        %215 = vmatprep.subr.mxu0 0.0
        %216 = vmatpush2.msra.mxu0 0.0
        %217 = vmatprep.subr.mxu0 0.0
        %218 = vmatpush2.msra.mxu0 0.0
        %219 = vmatprep.subr.mxu0 0.0
        %220 = vmatpush2.msra.mxu0 0.0
        %221 = vmatprep.subr.mxu0 0.0
        %222 = vmatpush2.msra.mxu0 0.0
        %223 = vmatprep.subr.mxu0 0.0
        %224 = vmatpush2.msra.mxu0 0.0
        %225 = vmatprep.subr.mxu0 0.0
        %226 = vmatpush2.msra.mxu0 0.0
        %227 = vmatprep.subr.mxu0 0.0
        %228 = vmatpush2.msra.mxu0 0.0
        %229 = vmatprep.subr.mxu0 0.0
        %230 = vmatpush2.msra.mxu0 0.0
        %231 = vmatprep.subr.mxu0 0.0
        %232 = vmatpush2.msra.mxu0 0.0
        %233 = vmatprep.subr.mxu0 0.0
        %234 = vmatpush2.msra.mxu0 0.0
        %235 = vmatprep.subr.mxu0 0.0
        %236 = vmatpush2.msra.mxu0 0.0
        %237 = vmatprep.subr.mxu0 0.0
        %238 = vmatpush2.msra.mxu0 0.0
        %239 = vmatprep.subr.mxu0 0.0
        %240 = vmatpush2.msra.mxu0 0.0
        %241 = vmatprep.subr.mxu0 0.0
        %242 = vmatpush2.msra.mxu0 0.0
        %243 = vmatprep.subr.mxu0 0.0
        %244 = vmatpush2.msra.mxu0 0.0
        %245 = vmatprep.mubr.f32.mxu0 0.0
        %246 = vmatmul.mubr.f32.gmra.mxu0 %v179
        %v247 = vpop.f32.mrf.mxu0
        %v248 = vadd.f32 0.0, %v247
        %v249 = vpop.f32.mrf.mxu0
        %250 = vdwg.mxu0
        %v251 = vlaneseq
        %v252 = vshrl.u32 %v251, 7
        %v253 = vlaneseq
        %v254 = vand.u32 %v253, 127
        %vm255 = vcmp.gt.s32.totalorder %v254, %v252
        %v256 = vmul.f32 %v248, 0.25
        %258 = vrot.lane.b32.xlu0 %v248, 96
        %v259 = vpop.permute.xlu0 %258
        %v261 = vsel %vm177, %v256, 0
        %v263 = vsel %vm177, %v259, 0
        %265 = vmatprep.subr.mxu0 0.0
        %266 = vmatpush1.xpose.msra.mxu0 0.0
        %267 = vmatprep.subr.mxu0 0.0
        %268 = vmatpush1.xpose.msra.mxu0 0.0
        %269 = vmatprep.subr.mxu0 0.0
        %270 = vmatpush1.xpose.msra.mxu0 0.0
        %271 = vmatprep.subr.mxu0 0.0
        %272 = vmatpush1.xpose.msra.mxu0 0.0
        %273 = vmatprep.subr.mxu0 0.0
        %274 = vmatpush1.xpose.msra.mxu0 0.0
        %275 = vmatprep.subr.mxu0 0.0
        %276 = vmatpush1.xpose.msra.mxu0 0.0
        %277 = vmatprep.subr.mxu0 0.0
        %278 = vmatpush1.xpose.msra.mxu0 0.0
        %279 = vmatprep.subr.mxu0 0.0
        %280 = vmatpush1.xpose.msra.mxu0 0.0
        %281 = vmatprep.subr.mxu0 0.0
        %282 = vmatpush1.xpose.msra.mxu0 0.0
        %283 = vmatprep.subr.mxu0 0.0
        %284 = vmatpush1.xpose.msra.mxu0 0.0
        %285 = vmatprep.subr.mxu0 0.0
        %286 = vmatpush1.xpose.msra.mxu0 0.0
        %287 = vmatprep.subr.mxu0 0.0
        %288 = vmatpush1.xpose.msra.mxu0 0.0
        %289 = vmatprep.subr.mxu0 0.0
        %290 = vmatpush1.xpose.msra.mxu0 0.0
        %291 = vmatprep.subr.mxu0 0.0
        %292 = vmatpush1.xpose.msra.mxu0 0.0
        %293 = vmatprep.subr.mxu0 0.0
        %294 = vmatpush1.xpose.msra.mxu0 0.0
        %295 = vmatprep.subr.mxu0 0.0
        %296 = vmatpush1.xpose.msra.mxu0 %v263
        %297 = vmatprep.subr.mxu0 0.0
        %298 = vmatpush2.xpose.msra.mxu0 0.0
        %299 = vmatprep.subr.mxu0 0.0
        %300 = vmatpush2.xpose.msra.mxu0 0.0
        %301 = vmatprep.subr.mxu0 0.0
        %302 = vmatpush2.xpose.msra.mxu0 0.0
        %303 = vmatprep.subr.mxu0 0.0
        %304 = vmatpush2.xpose.msra.mxu0 0.0
        %305 = vmatprep.subr.mxu0 0.0
        %306 = vmatpush2.xpose.msra.mxu0 0.0
        %307 = vmatprep.subr.mxu0 0.0
        %308 = vmatpush2.xpose.msra.mxu0 0.0
        %309 = vmatprep.subr.mxu0 0.0
        %310 = vmatpush2.xpose.msra.mxu0 0.0
        %311 = vmatprep.subr.mxu0 0.0
        %312 = vmatpush2.xpose.msra.mxu0 0.0
        %313 = vmatprep.subr.mxu0 0.0
        %314 = vmatpush2.xpose.msra.mxu0 0.0
        %315 = vmatprep.subr.mxu0 0.0
        %316 = vmatpush2.xpose.msra.mxu0 0.0
        %317 = vmatprep.subr.mxu0 0.0
        %318 = vmatpush2.xpose.msra.mxu0 0.0
        %319 = vmatprep.subr.mxu0 0.0
        %320 = vmatpush2.xpose.msra.mxu0 0.0
        %321 = vmatprep.subr.mxu0 0.0
        %322 = vmatpush2.xpose.msra.mxu0 0.0
        %323 = vmatprep.subr.mxu0 0.0
        %324 = vmatpush2.xpose.msra.mxu0 0.0
        %325 = vmatprep.subr.mxu0 0.0
        %326 = vmatpush2.xpose.msra.mxu0 0.0
        %327 = vmatprep.subr.mxu0 0.0
        %328 = vmatpush2.xpose.msra.mxu0 0.0
        %329 = vmatprep.mubr.f32.mxu0 0.0
        %330 = vmatmul.mubr.f32.gmra.mxu0 %v261
        %v331 = vpop.f32.mrf.mxu0
        %v332 = vadd.f32 0.0, %v331
        %v333 = vpop.f32.mrf.mxu0
        %334 = vdwg.mxu0
        %v335 = vsel %vm255, -inf, %v332
        %vm336 = vcmask 64512
        %v337 = vsel %vm336, %v335, -inf
        %338 = vmax.xlane.f32.xlu0 %v337
        %v339 = vpop.xlane.xlu0 %338
        %v340 = vsub.f32 %v335, %v339
        %v341 = vmul.f32 %v340, 1.442695
        %v342 = vpow.pop %v341
        %v343 = vsel %vm336, %v342, 0.0
        %344 = vadd.xlane.f32.xlu0 %v343
        %v345 = vpop.xlane.xlu0 %344
        %v346 = vrcp.pop %v345
        %v347 = vmul.f32 %v342, %v346
        %348 = vrot.lane.b32.xlu0 %v248, 64
        %v349 = vpop.permute.xlu0 %348
        %v352 = vsel %vm336, %v347, 0
        %354 = vmatprep.subr.mxu0 0.0
        %355 = vmatpush1.msra.mxu0 0.0
        %356 = vmatprep.subr.mxu0 0.0
        %357 = vmatpush1.msra.mxu0 0.0
        %358 = vmatprep.subr.mxu0 0.0
        %359 = vmatpush1.msra.mxu0 0.0
        %360 = vmatprep.subr.mxu0 0.0
        %361 = vmatpush1.msra.mxu0 0.0
        %362 = vmatprep.subr.mxu0 0.0
        %363 = vmatpush1.msra.mxu0 0.0
        %364 = vmatprep.subr.mxu0 0.0
        %365 = vmatpush1.msra.mxu0 0.0
        %366 = vmatprep.subr.mxu0 0.0
        %367 = vmatpush1.msra.mxu0 0.0
        %368 = vmatprep.subr.mxu0 0.0
        %369 = vmatpush1.msra.mxu0 0.0
        %370 = vmatprep.subr.mxu0 0.0
        %371 = vmatpush1.msra.mxu0 0.0
        %372 = vmatprep.subr.mxu0 0.0
        %373 = vmatpush1.msra.mxu0 0.0
        %374 = vmatprep.subr.mxu0 0.0
        %375 = vmatpush1.msra.mxu0 0.0
        %376 = vmatprep.subr.mxu0 0.0
        %377 = vmatpush1.msra.mxu0 0.0
        %378 = vmatprep.subr.mxu0 0.0
        %379 = vmatpush1.msra.mxu0 0.0
        %380 = vmatprep.subr.mxu0 0.0
        %381 = vmatpush1.msra.mxu0 0.0
        %382 = vmatprep.subr.mxu0 0.0
        %383 = vmatpush1.msra.mxu0 0.0
        %384 = vmatprep.subr.mxu0 0.0
        %385 = vmatpush1.msra.mxu0 %v349
        %386 = vmatprep.subr.mxu0 0.0
        %387 = vmatpush2.msra.mxu0 0.0
        %388 = vmatprep.subr.mxu0 0.0
        %389 = vmatpush2.msra.mxu0 0.0
        %390 = vmatprep.subr.mxu0 0.0
        %391 = vmatpush2.msra.mxu0 0.0
        %392 = vmatprep.subr.mxu0 0.0
        %393 = vmatpush2.msra.mxu0 0.0
        %394 = vmatprep.subr.mxu0 0.0
        %395 = vmatpush2.msra.mxu0 0.0
        %396 = vmatprep.subr.mxu0 0.0
        %397 = vmatpush2.msra.mxu0 0.0
        %398 = vmatprep.subr.mxu0 0.0
        %399 = vmatpush2.msra.mxu0 0.0
        %400 = vmatprep.subr.mxu0 0.0
        %401 = vmatpush2.msra.mxu0 0.0
        %402 = vmatprep.subr.mxu0 0.0
        %403 = vmatpush2.msra.mxu0 0.0
        %404 = vmatprep.subr.mxu0 0.0
        %405 = vmatpush2.msra.mxu0 0.0
        %406 = vmatprep.subr.mxu0 0.0
        %407 = vmatpush2.msra.mxu0 0.0
        %408 = vmatprep.subr.mxu0 0.0
        %409 = vmatpush2.msra.mxu0 0.0
        %410 = vmatprep.subr.mxu0 0.0
        %411 = vmatpush2.msra.mxu0 0.0
        %412 = vmatprep.subr.mxu0 0.0
        %413 = vmatpush2.msra.mxu0 0.0
        %414 = vmatprep.subr.mxu0 0.0
        %415 = vmatpush2.msra.mxu0 0.0
        %416 = vmatprep.subr.mxu0 0.0
        %417 = vmatpush2.msra.mxu0 0.0
        %418 = vmatprep.mubr.f32.mxu0 0.0
        %419 = vmatmul.mubr.f32.gmra.mxu0 %v352
        %v420 = vpop.f32.mrf.mxu0
        %v421 = vadd.f32 0.0, %v420
        %v422 = vpop.f32.mrf.mxu0
        %423 = vdwg.mxu0
        %424 = vrot.lane.b32.xlu0 %v256, 112
        %v425 = vpop.permute.xlu0 %424
        %426 = vrot.lane.b32.xlu0 %v248, 80
        %v427 = vpop.permute.xlu0 %426
        %v428 = vsel %vm177, %v425, 0
        %v430 = vsel %vm177, %v427, 0
        %432 = vmatprep.subr.mxu0 0.0
        %433 = vmatpush1.xpose.msra.mxu0 0.0
        %434 = vmatprep.subr.mxu0 0.0
        %435 = vmatpush1.xpose.msra.mxu0 0.0
        %436 = vmatprep.subr.mxu0 0.0
        %437 = vmatpush1.xpose.msra.mxu0 0.0
        %438 = vmatprep.subr.mxu0 0.0
        %439 = vmatpush1.xpose.msra.mxu0 0.0
        %440 = vmatprep.subr.mxu0 0.0
        %441 = vmatpush1.xpose.msra.mxu0 0.0
        %442 = vmatprep.subr.mxu0 0.0
        %443 = vmatpush1.xpose.msra.mxu0 0.0
        %444 = vmatprep.subr.mxu0 0.0
        %445 = vmatpush1.xpose.msra.mxu0 0.0
        %446 = vmatprep.subr.mxu0 0.0
        %447 = vmatpush1.xpose.msra.mxu0 0.0
        %448 = vmatprep.subr.mxu0 0.0
        %449 = vmatpush1.xpose.msra.mxu0 0.0
        %450 = vmatprep.subr.mxu0 0.0
        %451 = vmatpush1.xpose.msra.mxu0 0.0
        %452 = vmatprep.subr.mxu0 0.0
        %453 = vmatpush1.xpose.msra.mxu0 0.0
        %454 = vmatprep.subr.mxu0 0.0
        %455 = vmatpush1.xpose.msra.mxu0 0.0
        %456 = vmatprep.subr.mxu0 0.0
        %457 = vmatpush1.xpose.msra.mxu0 0.0
        %458 = vmatprep.subr.mxu0 0.0
        %459 = vmatpush1.xpose.msra.mxu0 0.0
        %460 = vmatprep.subr.mxu0 0.0
        %461 = vmatpush1.xpose.msra.mxu0 0.0
        %462 = vmatprep.subr.mxu0 0.0
        %463 = vmatpush1.xpose.msra.mxu0 %v430
        %464 = vmatprep.subr.mxu0 0.0
        %465 = vmatpush2.xpose.msra.mxu0 0.0
        %466 = vmatprep.subr.mxu0 0.0
        %467 = vmatpush2.xpose.msra.mxu0 0.0
        %468 = vmatprep.subr.mxu0 0.0
        %469 = vmatpush2.xpose.msra.mxu0 0.0
        %470 = vmatprep.subr.mxu0 0.0
        %471 = vmatpush2.xpose.msra.mxu0 0.0
        %472 = vmatprep.subr.mxu0 0.0
        %473 = vmatpush2.xpose.msra.mxu0 0.0
        %474 = vmatprep.subr.mxu0 0.0
        %475 = vmatpush2.xpose.msra.mxu0 0.0
        %476 = vmatprep.subr.mxu0 0.0
        %477 = vmatpush2.xpose.msra.mxu0 0.0
        %478 = vmatprep.subr.mxu0 0.0
        %479 = vmatpush2.xpose.msra.mxu0 0.0
        %480 = vmatprep.subr.mxu0 0.0
        %481 = vmatpush2.xpose.msra.mxu0 0.0
        %482 = vmatprep.subr.mxu0 0.0
        %483 = vmatpush2.xpose.msra.mxu0 0.0
        %484 = vmatprep.subr.mxu0 0.0
        %485 = vmatpush2.xpose.msra.mxu0 0.0
        %486 = vmatprep.subr.mxu0 0.0
        %487 = vmatpush2.xpose.msra.mxu0 0.0
        %488 = vmatprep.subr.mxu0 0.0
        %489 = vmatpush2.xpose.msra.mxu0 0.0
        %490 = vmatprep.subr.mxu0 0.0
        %491 = vmatpush2.xpose.msra.mxu0 0.0
        %492 = vmatprep.subr.mxu0 0.0
        %493 = vmatpush2.xpose.msra.mxu0 0.0
        %494 = vmatprep.subr.mxu0 0.0
        %495 = vmatpush2.xpose.msra.mxu0 0.0
        %496 = vmatprep.mubr.f32.mxu0 0.0
        %497 = vmatmul.mubr.f32.gmra.mxu0 %v428
        %v498 = vpop.f32.mrf.mxu0
        %v499 = vadd.f32 0.0, %v498
        %v500 = vpop.f32.mrf.mxu0
        %501 = vdwg.mxu0
        %v502 = vsel %vm255, -inf, %v499
        %v503 = vsel %vm336, %v502, -inf
        %504 = vmax.xlane.f32.xlu0 %v503
        %v505 = vpop.xlane.xlu0 %504
        %v506 = vsub.f32 %v502, %v505
        %v507 = vmul.f32 %v506, 1.442695
        %v508 = vpow.pop %v507
        %v509 = vsel %vm336, %v508, 0.0
        %510 = vadd.xlane.f32.xlu0 %v509
        %v511 = vpop.xlane.xlu0 %510
        %v512 = vrcp.pop %v511
        %v513 = vmul.f32 %v508, %v512
        %514 = vrot.lane.b32.xlu0 %v248, 48
        %v515 = vpop.permute.xlu0 %514
        %v518 = vsel %vm336, %v513, 0
        %520 = vmatprep.subr.mxu0 0.0
        %521 = vmatpush1.msra.mxu0 0.0
        %522 = vmatprep.subr.mxu0 0.0
        %523 = vmatpush1.msra.mxu0 0.0
        %524 = vmatprep.subr.mxu0 0.0
        %525 = vmatpush1.msra.mxu0 0.0
        %526 = vmatprep.subr.mxu0 0.0
        %527 = vmatpush1.msra.mxu0 0.0
        %528 = vmatprep.subr.mxu0 0.0
        %529 = vmatpush1.msra.mxu0 0.0
        %530 = vmatprep.subr.mxu0 0.0
        %531 = vmatpush1.msra.mxu0 0.0
        %532 = vmatprep.subr.mxu0 0.0
        %533 = vmatpush1.msra.mxu0 0.0
        %534 = vmatprep.subr.mxu0 0.0
        %535 = vmatpush1.msra.mxu0 0.0
        %536 = vmatprep.subr.mxu0 0.0
        %537 = vmatpush1.msra.mxu0 0.0
        %538 = vmatprep.subr.mxu0 0.0
        %539 = vmatpush1.msra.mxu0 0.0
        %540 = vmatprep.subr.mxu0 0.0
        %541 = vmatpush1.msra.mxu0 0.0
        %542 = vmatprep.subr.mxu0 0.0
        %543 = vmatpush1.msra.mxu0 0.0
        %544 = vmatprep.subr.mxu0 0.0
        %545 = vmatpush1.msra.mxu0 0.0
        %546 = vmatprep.subr.mxu0 0.0
        %547 = vmatpush1.msra.mxu0 0.0
        %548 = vmatprep.subr.mxu0 0.0
        %549 = vmatpush1.msra.mxu0 0.0
        %550 = vmatprep.subr.mxu0 0.0
        %551 = vmatpush1.msra.mxu0 %v515
        %552 = vmatprep.subr.mxu0 0.0
        %553 = vmatpush2.msra.mxu0 0.0
        %554 = vmatprep.subr.mxu0 0.0
        %555 = vmatpush2.msra.mxu0 0.0
        %556 = vmatprep.subr.mxu0 0.0
        %557 = vmatpush2.msra.mxu0 0.0
        %558 = vmatprep.subr.mxu0 0.0
        %559 = vmatpush2.msra.mxu0 0.0
        %560 = vmatprep.subr.mxu0 0.0
        %561 = vmatpush2.msra.mxu0 0.0
        %562 = vmatprep.subr.mxu0 0.0
        %563 = vmatpush2.msra.mxu0 0.0
        %564 = vmatprep.subr.mxu0 0.0
        %565 = vmatpush2.msra.mxu0 0.0
        %566 = vmatprep.subr.mxu0 0.0
        %567 = vmatpush2.msra.mxu0 0.0
        %568 = vmatprep.subr.mxu0 0.0
        %569 = vmatpush2.msra.mxu0 0.0
        %570 = vmatprep.subr.mxu0 0.0
        %571 = vmatpush2.msra.mxu0 0.0
        %572 = vmatprep.subr.mxu0 0.0
        %573 = vmatpush2.msra.mxu0 0.0
        %574 = vmatprep.subr.mxu0 0.0
        %575 = vmatpush2.msra.mxu0 0.0
        %576 = vmatprep.subr.mxu0 0.0
        %577 = vmatpush2.msra.mxu0 0.0
        %578 = vmatprep.subr.mxu0 0.0
        %579 = vmatpush2.msra.mxu0 0.0
        %580 = vmatprep.subr.mxu0 0.0
        %581 = vmatpush2.msra.mxu0 0.0
        %582 = vmatprep.subr.mxu0 0.0
        %583 = vmatpush2.msra.mxu0 0.0
        %584 = vmatprep.mubr.f32.mxu0 0.0
        %585 = vmatmul.mubr.f32.gmra.mxu0 %v518
        %v586 = vpop.f32.mrf.mxu0
        %v587 = vadd.f32 0.0, %v586
        %v588 = vpop.f32.mrf.mxu0
        %589 = vdwg.mxu0
        %591 = vrot.lane.b32.xlu0 %v587, 16
        %v592 = vpop.permute.xlu0 %591
        %v594 = vsel %vm177, %v421, %v592
        %vm595 = vcmask 261120
        %596 = vst.msk [vmem:[%s173] sm:$0xff] %vm595, %v594
        %s597 = sand.u32 %s75, 1
        %s598 = scalar_lea.sflag [#allocation4], %s597
        %s599 = sand.u32 %s75, 1
        %s600 = smul.addr %s599, 8
        %s601 = scalar_lea.vmem [#allocation7], %s600
        // Predicated region
        $region37: #{tpu_custom_call.1} parent=27 // pred_check
          %p602 = pneg %p85
        $region38: #{tpu_custom_call.1} parent=27 // pred_check_branch
          %604 = sbr.rel (%p602) target = $region40
        $region39: #{tpu_custom_call.1} parent=27 // pred_region
          %s606 = ssub.s32 128, 128
          %607 = vsyncadd %s598, %s606
          %s608 = smul.addr %s20, 128
          %s609 = scalar_lea.hbm %s2, %s608
          %s611 = sshll.u32 %s601, 4
          %s612 = int_to_ptr.vmem [resolvable:$true] %s611
          %614 = dma.vmem_to_hbm [thread:$0]  %s612, 128, %s609, %s598
        $region40: #{tpu_custom_call.1} parent=27 // pred_fallthru
          _
      $region28: #{tpu_custom_call.1} parent=5 // pred_fallthru
        _
      %p615 = scmp.le.s32.totalorder 2, %s15
      // Predicated region
      $region41: #{tpu_custom_call.1} parent=5 // pred_check
        %p616 = pneg %p615
      $region42: #{tpu_custom_call.1} parent=5 // pred_check_branch
        %618 = sbr.rel (%p616) target = $region44
      $region43: #{tpu_custom_call.1} parent=5 // pred_region
        %s619 = ssub.s32 %s15, 2
        // Predicated region
        $region45: #{tpu_custom_call.1} parent=43 // pred_check
          %p620 = pneg %p91
        $region46: #{tpu_custom_call.1} parent=43 // pred_check_branch
          %622 = sbr.rel (%p620) target = $region48
        $region47: #{tpu_custom_call.1} parent=43 // pred_region
          %s623 = sand.u32 %s76, 1
          %s624 = scalar_lea.sflag [#allocation4], %s623
          %s625 = sand.u32 %s76, 1
          %s626 = smul.addr %s625, 8
          %s627 = scalar_lea.vmem [#allocation7], %s626
          %628 = dma.done %s624, 128
        $region48: #{tpu_custom_call.1} parent=43 // pred_fallthru
          _
      $region44: #{tpu_custom_call.1} parent=5 // pred_fallthru
        _
    $region6: #{tpu_custom_call.1} parent=1 // loop_footer
      %s19 = sadd.s32 1, %s15
    $region7: #{tpu_custom_call.1} parent=1 // loop_footer_branch
      %14 = sbr.rel target = $region3
    $region8: #{tpu_custom_call.1} parent=1 // loop_exit
      _
    %629 = vsyncpa [#allocation3], 1
    %s630 = scalar_lea.sflag [#allocation3], 1
    %631 = vsyncpa %s630, 1
    %632 = vsyncpa [#allocation6], 1
    %633 = vsyncpa [#allocation4], 1
    %s634 = scalar_lea.sflag [#allocation4], 1
    %635 = vsyncpa %s634, 1

</llo_original>
